<compile_context>
chip_gen: v6e
topology: v6e:2x2x1
jax: 0.10.0
libtpu: 0.0.40
codegen_flags: <defaults>
</compile_context>

<pallas_src>
import functools

import jax
import jax.numpy as jnp
from jax import lax
from jax.experimental import pallas as pl
from jax.experimental.pallas import tpu as pltpu

LANES = 128
TILE_ROWS_MAX = 8192                 # 8192 * 128 * 4 B = 4 MiB per f32 block
VMEM_LIMIT_BYTES = 32 * 1024 * 1024  # lifts v5e's 16 MiB default; <= physical everywhere


def _tc_shards():
    """(num_shards, leading-axis dimension_semantics) for the local chip."""
    try:
        kind = jax.devices()[0].device_kind.lower()
    except Exception:  # defensive: never let introspection break the kernel
        return 1, pltpu.ARBITRARY
    if "7" in kind:                      # v7x: 2 TensorCores -> split the stream
        return 2, pltpu.CORE_PARALLEL
    return 1, pltpu.ARBITRARY            # v4 / v5e / v6e: single serial shard


def _bce_loss(x, y):
    # Numerically stable BCE-with-logits (matches PyTorch's formulation).
    return jnp.maximum(x, 0.0) - x * y + jnp.log1p(jnp.exp(-jnp.abs(x)))


def _bce_sum_kernel(x_ref, y_ref, out_ref, acc_ref, *,
                    block_rows, blocks_per_shard, n_rows):
    c = pl.program_id(0)          # shard index (CORE_PARALLEL on v7x)
    i = pl.program_id(1)          # streaming block index within the shard

    @pl.when(i == 0)
    def _init():
        acc_ref[...] = jnp.zeros_like(acc_ref)

    x = x_ref[...].astype(jnp.float32)
    y = y_ref[...].astype(jnp.float32)
    loss = _bce_loss(x, y)

    # Logical block index; it may exceed the real block count for the clamped
    # duplicate block of the padded shard -> fully masked below.
    lb = c * blocks_per_shard + i
    fully_valid = (lb + 1) * block_rows <= n_rows

    def _accumulate(vals):
        if block_rows % 8 == 0:
            # Pure VPU path: vreg+vreg adds into the (8, 128) accumulator; the
            # cross-sublane / cross-lane reduce is deferred to finalize.
            acc_ref[...] += jnp.sum(
                vals.reshape(block_rows // 8, 8, LANES), axis=0)
        else:
            # Tiny full-array block (rows < 8): single sublane reduce.
            acc_ref[0:1, :] = acc_ref[0:1, :] + jnp.sum(
                vals, axis=0, keepdims=True)

    @pl.when(fully_valid)
    def _steady():
        # Interior block: unmasked fast path.
        _accumulate(loss)

    @pl.when(jnp.logical_not(fully_valid))
    def _edge():
        # Partial final block (garbage rows beyond the array) or a fully
        # masked duplicate block: select, never arithmetic-mask.
        row = lb * block_rows + lax.broadcasted_iota(jnp.int32, loss.shape, 0)
        _accumulate(jnp.where(row < n_rows, loss, 0.0))

    @pl.when(i == pl.num_programs(1) - 1)
    def _finalize():
        # One cross-sublane + cross-lane reduce and one scalar SMEM store per
        # shard, not per step.
        out_ref[0, 0] = jnp.sum(acc_ref[...])


@jax.jit
def bce_with_logits_mean(pred, target):
    """Equivalent of nn.BCEWithLogitsLoss(reduction='mean')(pred, target)."""
    assert pred.shape == target.shape
    n_elems = pred.size

    x = pred.reshape(-1)
    y = target.reshape(-1)

    n_rows = n_elems // LANES
    rem = n_elems % LANES

    # The <128-element ragged tail (if any) is summed with plain jnp so the
    # kernel only ever streams a lane-dense (n_rows, 128) view and the wrapper
    # never pads / copies the whole tensor.
    if rem:
        xt = x[n_rows * LANES:].astype(jnp.float32)
        yt = y[n_rows * LANES:].astype(jnp.float32)
        tail = jnp.sum(_bce_loss(xt, yt))
    else:
        tail = jnp.float32(0.0)

    if n_rows == 0:  # whole input smaller than one lane row: no kernel needed
        return (tail / jnp.float32(n_elems)).astype(jnp.float32)

    if rem:
        # TODO(synk): for lane-unaligned sizes this prefix slice is one copy;
        # avoiding it entirely needs manual flat-offset DMA via pl.ANY refs.
        x2 = x[: n_rows * LANES].reshape(n_rows, LANES)
        y2 = y[: n_rows * LANES].reshape(n_rows, LANES)
    else:
        x2 = x.reshape(n_rows, LANES)   # zero-copy
        y2 = y.reshape(n_rows, LANES)

    # Either 8192 (multiple of 32 -> valid sublane tiling for f32/bf16/int8)
    # or the full row extent (always a legal full-dim block).
    block_rows = min(TILE_ROWS_MAX, n_rows)
    num_blocks = pl.cdiv(n_rows, block_rows)

    num_shards, lead_sem = _tc_shards()
    num_shards = min(num_shards, num_blocks)
    blocks_per_shard = pl.cdiv(num_blocks, num_shards)
    grid = (num_shards, blocks_per_shard)
    # Invariant the in-kernel mask relies on: any duplicated / clamped block of
    # the padded shard starts at or after n_rows (so it is fully masked).
    assert num_shards * blocks_per_shard * block_rows >= n_rows

    def in_map(c, i):
        # Clamp so we never issue a fully out-of-range DMA; duplicated /
        # out-of-range blocks are fully masked inside the kernel.
        return (jnp.minimum(c * blocks_per_shard + i, num_blocks - 1), 0)

    in_spec = pl.BlockSpec((block_rows, LANES), in_map)

    kernel = functools.partial(
        _bce_sum_kernel,
        block_rows=block_rows,
        blocks_per_shard=blocks_per_shard,
        n_rows=n_rows,
    )

    partials = pl.pallas_call(
        kernel,
        out_shape=jax.ShapeDtypeStruct((num_shards, 1), jnp.float32),
        grid_spec=pltpu.PrefetchScalarGridSpec(
            num_scalar_prefetch=0,
            grid=grid,
            in_specs=[in_spec, in_spec],
            out_specs=pl.BlockSpec((1, 1), lambda c, i: (c, 0),
                                   memory_space=pltpu.SMEM),
            scratch_shapes=[pltpu.VMEM((8, LANES), jnp.float32)],
        ),
        compiler_params=pltpu.CompilerParams(
            dimension_semantics=(lead_sem, pltpu.ARBITRARY),
            vmem_limit_bytes=VMEM_LIMIT_BYTES,
        ),
    )(x2, y2)

    # 'mean' reduction -> 0-d scalar, like PyTorch.
    total = jnp.sum(partials) + tail
    return (total / jnp.float32(n_elems)).astype(jnp.float32)


def _reference(pred, target):
    x = pred.astype(jnp.float32)
    y = target.astype(jnp.float32)
    return jnp.mean(_bce_loss(x, y))


if __name__ == "__main__":
    key = jax.random.PRNGKey(0)
    k1, k2 = jax.random.split(key)

    # NCHW, small shapes: batch=2, channels=4, spatial=16x16
    pred = jax.random.normal(k1, (2, 4, 16, 16), dtype=jnp.float32)
    target = (jax.random.uniform(k2, (2, 4, 16, 16)) > 0.5).astype(jnp.float32)

    loss = bce_with_logits_mean(pred, target)
    jax.block_until_ready(loss)

    ref = _reference(pred, target)
    assert jnp.allclose(loss, ref, atol=1e-5, rtol=1e-5), (loss, ref)

    print("KERNEL_OK")
</pallas_src>

<mosaic_0001>
module attributes {stable_mosaic.version = 11 : i64} {
  func.func @_bce_sum_kernel(%arg0: i32, %arg1: i32, %arg2: memref<16x128xf32, #tpu.memory_space<vmem>>, %arg3: memref<16x128xf32, #tpu.memory_space<vmem>>, %arg4: memref<1x1xf32, #tpu.memory_space<smem>>, %arg5: memref<8x128xf32, #tpu.memory_space<vmem>>) attributes {dimension_semantics = [#tpu.dimension_semantics<arbitrary>, #tpu.dimension_semantics<arbitrary>], iteration_bounds = array<i64: 1, 1>, scalar_prefetch = 0 : i64, scratch_operands = 1 : i64, tpu.core_type = #tpu.core_type<tc>, window_params = [{transform_indices = @transform_0, window_bounds = array<i64: 16, 128>}, {transform_indices = @transform_1, window_bounds = array<i64: 16, 128>}, {transform_indices = @transform_2, window_bounds = array<i64: 1, 1>}]} {
    %c0_i32 = arith.constant 0 : i32
    %0 = arith.cmpi eq, %arg1, %c0_i32 : i32
    %1 = arith.extui %0 : i1 to i32
    %c0_i32_0 = arith.constant 0 : i32
    %2 = arith.cmpi ne, %1, %c0_i32_0 : i32
    scf.if %2 {
      %cst_11 = arith.constant 0.000000e+00 : f32
      %28 = vector.broadcast %cst_11 : f32 to vector<8x128xf32>
      %c0_12 = arith.constant 0 : index
      %c0_13 = arith.constant 0 : index
      %29 = vector.load %arg5[%c0_12, %c0_13] : memref<8x128xf32, #tpu.memory_space<vmem>>, vector<8x128xf32>
      tpu.vector_store %arg5[%c0_12, %c0_13], %28 {strides = array<i32>} : memref<8x128xf32, #tpu.memory_space<vmem>>, vector<8x128xf32>,
    } else {
    }
    %c0 = arith.constant 0 : index
    %c0_1 = arith.constant 0 : index
    %3 = vector.load %arg2[%c0, %c0_1] : memref<16x128xf32, #tpu.memory_space<vmem>>, vector<16x128xf32>
    %c0_2 = arith.constant 0 : index
    %c0_3 = arith.constant 0 : index
    %4 = vector.load %arg3[%c0_2, %c0_3] : memref<16x128xf32, #tpu.memory_space<vmem>>, vector<16x128xf32>
    %cst = arith.constant 0.000000e+00 : f32
    %5 = vector.broadcast %cst : f32 to vector<16x128xf32>
    %6 = arith.maximumf %3, %5 : vector<16x128xf32>
    %7 = arith.mulf %3, %4 : vector<16x128xf32>
    %8 = arith.subf %6, %7 : vector<16x128xf32>
    %9 = math.absf %3 : vector<16x128xf32>
    %cst_4 = arith.constant 0.000000e+00 : f32
    %10 = vector.broadcast %cst_4 : f32 to vector<16x128xf32>
    %11 = arith.subf %10, %9 : vector<16x128xf32>
    %12 = math.exp %11 : vector<16x128xf32>
    %13 = math.log1p %12 : vector<16x128xf32>
    %14 = arith.addf %8, %13 : vector<16x128xf32>
    %c1_i32 = arith.constant 1 : i32
    %15 = arith.muli %arg0, %c1_i32 : i32
    %16 = arith.addi %15, %arg1 : i32
    %c1_i32_5 = arith.constant 1 : i32
    %17 = arith.addi %16, %c1_i32_5 : i32
    %c16_i32 = arith.constant 16 : i32
    %18 = arith.muli %17, %c16_i32 : i32
    %c16_i32_6 = arith.constant 16 : i32
    %19 = arith.cmpi sle, %18, %c16_i32_6 : i32
    %20 = arith.extui %19 : i1 to i32
    %c0_i32_7 = arith.constant 0 : i32
    %21 = arith.cmpi ne, %20, %c0_i32_7 : i32
    scf.if %21 {
      %c0_11 = arith.constant 0 : index
      %c0_12 = arith.constant 0 : index
      %28 = vector.load %arg5[%c0_11, %c0_12] : memref<8x128xf32, #tpu.memory_space<vmem>>, vector<8x128xf32>
      %29 = vector.shape_cast %14 : vector<16x128xf32> to vector<2x8x128xf32>
      %cst_13 = arith.constant dense<0.000000e+00> : vector<8x128xf32>
      %30 = vector.multi_reduction <add>, %29, %cst_13 [0] : vector<2x8x128xf32> to vector<8x128xf32>
      %31 = arith.addf %28, %30 : vector<8x128xf32>
      %c0_14 = arith.constant 0 : index
      %c0_15 = arith.constant 0 : index
      %32 = vector.load %arg5[%c0_14, %c0_15] : memref<8x128xf32, #tpu.memory_space<vmem>>, vector<8x128xf32>
      tpu.vector_store %arg5[%c0_14, %c0_15], %31 {strides = array<i32>} : memref<8x128xf32, #tpu.memory_space<vmem>>, vector<8x128xf32>,
    } else {
    }
    %true = arith.constant true
    %22 = arith.xori %19, %true : i1
    %23 = arith.extui %22 : i1 to i32
    %c0_i32_8 = arith.constant 0 : i32
    %24 = arith.cmpi ne, %23, %c0_i32_8 : i32
    scf.if %24 {
      %c16_i32_11 = arith.constant 16 : i32
      %28 = arith.muli %16, %c16_i32_11 : i32
      %29 = tpu.iota {dimensions = array<i32: 0>} : vector<16x128xi32>
      %30 = vector.broadcast %28 : i32 to vector<16x128xi32>
      %31 = arith.addi %30, %29 : vector<16x128xi32>
      %c16_i32_12 = arith.constant 16 : i32
      %32 = vector.broadcast %c16_i32_12 : i32 to vector<16x128xi32>
      %33 = arith.cmpi slt, %31, %32 : vector<16x128xi32>
      %cst_13 = arith.constant 0.000000e+00 : f32
      %34 = vector.broadcast %cst_13 : f32 to vector<16x128xf32>
      %35 = arith.select %33, %14, %34 : vector<16x128xi1>, vector<16x128xf32>
      %c0_14 = arith.constant 0 : index
      %c0_15 = arith.constant 0 : index
      %36 = vector.load %arg5[%c0_14, %c0_15] : memref<8x128xf32, #tpu.memory_space<vmem>>, vector<8x128xf32>
      %37 = vector.shape_cast %35 : vector<16x128xf32> to vector<2x8x128xf32>
      %cst_16 = arith.constant dense<0.000000e+00> : vector<8x128xf32>
      %38 = vector.multi_reduction <add>, %37, %cst_16 [0] : vector<2x8x128xf32> to vector<8x128xf32>
      %39 = arith.addf %36, %38 : vector<8x128xf32>
      %c0_17 = arith.constant 0 : index
      %c0_18 = arith.constant 0 : index
      %40 = vector.load %arg5[%c0_17, %c0_18] : memref<8x128xf32, #tpu.memory_space<vmem>>, vector<8x128xf32>
      tpu.vector_store %arg5[%c0_17, %c0_18], %39 {strides = array<i32>} : memref<8x128xf32, #tpu.memory_space<vmem>>, vector<8x128xf32>,
    } else {
    }
    %c0_i32_9 = arith.constant 0 : i32
    %25 = arith.cmpi eq, %arg1, %c0_i32_9 : i32
    %26 = arith.extui %25 : i1 to i32
    %c0_i32_10 = arith.constant 0 : i32
    %27 = arith.cmpi ne, %26, %c0_i32_10 : i32
    scf.if %27 {
      %c0_11 = arith.constant 0 : index
      %c0_12 = arith.constant 0 : index
      %28 = vector.load %arg5[%c0_11, %c0_12] : memref<8x128xf32, #tpu.memory_space<vmem>>, vector<8x128xf32>
      %29 = vector.shape_cast %28 : vector<8x128xf32> to vector<1x8x128xf32>
      %cst_13 = arith.constant dense<0.000000e+00> : vector<1xf32>
      %30 = vector.multi_reduction <add>, %29, %cst_13 [1, 2] : vector<1x8x128xf32> to vector<1xf32>
      %31 = vector.shape_cast %30 : vector<1xf32> to vector<1x1x1xf32>
      %32 = vector.extract %31[0, 0, 0] : f32 from vector<1x1x1xf32>
      %c0_14 = arith.constant 0 : index
      %c0_15 = arith.constant 0 : index
      %33 = memref.load %arg4[%c0_14, %c0_15] : memref<1x1xf32, #tpu.memory_space<smem>>
      memref.store %32, %arg4[%c0_14, %c0_15] : memref<1x1xf32, #tpu.memory_space<smem>>
    } else {
    }
    return
  }
  func.func @transform_0(%arg0: i32, %arg1: i32) -> (i32, i32) {
    %c1_i32 = arith.constant 1 : i32
    %0 = arith.muli %arg0, %c1_i32 : i32
    %1 = arith.addi %0, %arg1 : i32
    %c0_i32 = arith.constant 0 : i32
    %2 = arith.minsi %1, %c0_i32 : i32
    %c0_i32_0 = arith.constant 0 : i32
    %c0_i32_1 = arith.constant 0 : i32
    return %2, %c0_i32_0 : i32, i32
  }
  func.func @transform_1(%arg0: i32, %arg1: i32) -> (i32, i32) {
    %c1_i32 = arith.constant 1 : i32
    %0 = arith.muli %arg0, %c1_i32 : i32
    %1 = arith.addi %0, %arg1 : i32
    %c0_i32 = arith.constant 0 : i32
    %2 = arith.minsi %1, %c0_i32 : i32
    %c0_i32_0 = arith.constant 0 : i32
    %c0_i32_1 = arith.constant 0 : i32
    return %2, %c0_i32_0 : i32, i32
  }
  func.func @transform_2(%arg0: i32, %arg1: i32) -> (i32, i32) {
    %c0_i32 = arith.constant 0 : i32
    %c0_i32_0 = arith.constant 0 : i32
    return %arg0, %c0_i32 : i32, i32
  }
}

</mosaic_0001>

<llo_original>
// kernel: bce_with_logits_mean.1
$region0: #{bce_with_logits_mean.1}
  #allocation0 [shape = 'u32[]', space=smem, size = 0x4, offset = 0x4, fixed_abs, tag = 'smem constant byte address 0x4 - core index']
  #allocation1 [shape = 'u32[144,128]{1,0:T(1,128)}', space=vmem, size = 0x12000, scoped, tag = 'internal scratch']
  #allocation2 [shape = 'f32[8,128]{1,0:T(8,128)}', space=vmem, size = 0x1000, scoped, tag = 'scratch operand']
  %s0 = inlined_call_operand.vmem [shape: f32[16,128], index: 0, kind: input, shape index: {}]
  %s1 = inlined_call_operand.vmem [shape: f32[16,128], index: 1, kind: input, shape index: {}]
  %s2 = inlined_call_operand.hbm [shape: f32[1,1], index: 2, kind: output, shape index: {}]
  %s3 = sld [smem:[#allocation0]]
  $region34: #{bce_with_logits_mean.1} parent=0
    _
  %s5 = ssub.s32 1, %s3
  %s6 = scalar_select 0, %s5, %s3
  $region1: #{bce_with_logits_mean.1} parent=0
    #allocation3 [shape = 'u8[512]{0}', space=smem, size = 0x200, scoped, tag = 'output window, operand 0, single buffered']
    #allocation4 [shape = 's32[1]{0}', space=sflag, size = 0x4, scoped, tag = 'scoped memory for bce_with_logits_mean.1']
    %7 = vsyncpa [#allocation4], 0
    // Predicated region
    $region2: #{bce_with_logits_mean.1} parent=1 // pred_check
      _
    $region3: #{bce_with_logits_mean.1} parent=1 // pred_check_branch
      %9 = sbr.rel (0) target = $region5
    $region4: #{bce_with_logits_mean.1} parent=1 // pred_region
      %s10 = sadd.s32 0, 0
      %p11 = scmp.lt.s32.totalorder %s10, 0
      %s12 = scalar_select %p11, %s10, 0
      %s13 = smul.u32 2, %s12
      %p14 = scmp.lt.s32.totalorder %s13, 1
      %s15 = scalar_select %p14, %s13, 1
      %s16 = smul.addr %s15, 8
      %s17 = scalar_lea.vmem %s0, %s16
      %s18 = sadd.s32 0, 0
      %p19 = scmp.lt.s32.totalorder %s18, 0
      %s20 = scalar_select %p19, %s18, 0
      %s21 = smul.u32 2, %s20
    $region5: #{bce_with_logits_mean.1} parent=1 // pred_fallthru
      _
    // Predicated region
    $region6: #{bce_with_logits_mean.1} parent=1 // pred_check
      _
    $region7: #{bce_with_logits_mean.1} parent=1 // pred_check_branch
      %23 = sbr.rel (0) target = $region9
    $region8: #{bce_with_logits_mean.1} parent=1 // pred_region
      %s24 = sadd.s32 0, 0
      %p25 = scmp.lt.s32.totalorder %s24, 0
      %s26 = scalar_select %p25, %s24, 0
      %s27 = smul.u32 2, %s26
      %p28 = scmp.lt.s32.totalorder %s27, 1
      %s29 = scalar_select %p28, %s27, 1
      %s30 = smul.addr %s29, 8
      %s31 = scalar_lea.vmem %s1, %s30
      %s32 = sadd.s32 0, 0
      %p33 = scmp.lt.s32.totalorder %s32, 0
      %s34 = scalar_select %p33, %s32, 0
      %s35 = smul.u32 2, %s34
    $region9: #{bce_with_logits_mean.1} parent=1 // pred_fallthru
      _
    %s36 = sadd.s32 0, 0
    %p37 = scmp.lt.s32.totalorder %s36, 0
    %s38 = scalar_select %p37, %s36, 0
    %s39 = smul.u32 2, %s38
    %p40 = scmp.lt.s32.totalorder %s39, 1
    %s41 = scalar_select %p40, %s39, 1
    %s42 = smul.addr %s41, 8
    %s43 = scalar_lea.vmem %s0, %s42
    %s44 = sadd.s32 0, 0
    %p45 = scmp.lt.s32.totalorder %s44, 0
    %s46 = scalar_select %p45, %s44, 0
    %s47 = smul.u32 2, %s46
    %p48 = scmp.lt.s32.totalorder %s47, 1
    %s49 = scalar_select %p48, %s47, 1
    %s50 = smul.addr %s49, 8
    %s51 = scalar_lea.vmem %s1, %s50
    %s52 = sadd.s32 0, 0
    %p53 = scmp.lt.s32.totalorder %s52, 0
    %s54 = scalar_select %p53, %s52, 0
    %s55 = smul.u32 2, %s54
    %p56 = scmp.lt.s32.totalorder %s55, 1
    %s57 = scalar_select %p56, %s55, 1
    %s58 = smul.addr %s57, 8
    %s59 = scalar_lea.vmem %s0, %s58
    %s60 = sadd.s32 0, 0
    %p61 = scmp.lt.s32.totalorder %s60, 0
    %s62 = scalar_select %p61, %s60, 0
    %s63 = smul.u32 2, %s62
    %s64 = sadd.s32 0, 0
    %p65 = scmp.lt.s32.totalorder %s64, 0
    %s66 = scalar_select %p65, %s64, 0
    %s67 = smul.u32 2, %s66
    %p68 = scmp.lt.s32.totalorder %s67, 1
    %s69 = scalar_select %p68, %s67, 1
    %s70 = smul.addr %s69, 8
    %s71 = scalar_lea.vmem %s1, %s70
    %s72 = sadd.s32 0, 0
    %p73 = scmp.lt.s32.totalorder %s72, 0
    %s74 = scalar_select %p73, %s72, 0
    %s75 = smul.u32 2, %s74
    %p76 = scmp.eq.s32.totalorder 0, 0
    // Predicated region
    $region10: #{bce_with_logits_mean.1} parent=1 // pred_check
      %p77 = pneg %p76
    $region11: #{bce_with_logits_mean.1} parent=1 // pred_check_branch
      %79 = sbr.rel (%p77) target = $region13
    $region12: #{bce_with_logits_mean.1} parent=1 // pred_region
      %80 = vst [vmem:[#allocation2] sm:$0xff] 0.0
    $region13: #{bce_with_logits_mean.1} parent=1 // pred_fallthru
      _
    %v81 = vld [vmem:[%s59] sm:$0xff]
    %v82 = vld [vmem:[%s59 + $0x8] sm:$0xff]
    %v83 = vld [vmem:[%s71] sm:$0xff]
    %v84 = vld [vmem:[%s71 + $0x8] sm:$0xff]
    %v85 = vmax.f32 %v81, 0.0
    %v86 = vmax.f32 %v82, 0.0
    %v87 = vmul.f32 %v81, %v83
    %v88 = vmul.f32 %v82, %v84
    %v89 = vsub.f32 %v85, %v87
    %v90 = vsub.f32 %v86, %v88
    %v91 = vand.u32 2147483647, %v81
    %v92 = vand.u32 2147483647, %v82
    %v93 = vsub.f32 0.0, %v91
    %v94 = vsub.f32 0.0, %v92
    %v95 = vmul.f32 %v93, 1.442695
    %v96 = vpow.pop %v95
    %v97 = vmul.f32 %v94, 1.442695
    %v98 = vpow.pop %v97
    %v99 = vadd.f32 %v96, 1.0
    %v100 = vlog2.pop %v99
    %v101 = vmul.f32 %v100, 0.6931472
    %v102 = vmul.f32 -0.5, %v96
    %v103 = vadd.f32 %v102, 1.0
    %v104 = vmul.f32 %v103, %v96
    %v105 = vand.u32 2147483647, %v96
    %vm106 = vcmp.lt.f32.partialorder %v105, 0.0004427343
    %v107 = vsel %vm106, %v104, %v101
    %v108 = vadd.f32 %v98, 1.0
    %v109 = vlog2.pop %v108
    %v110 = vmul.f32 %v109, 0.6931472
    %v111 = vmul.f32 -0.5, %v98
    %v112 = vadd.f32 %v111, 1.0
    %v113 = vmul.f32 %v112, %v98
    %v114 = vand.u32 2147483647, %v98
    %vm115 = vcmp.lt.f32.partialorder %v114, 0.0004427343
    %v116 = vsel %vm115, %v113, %v110
    %v117 = vadd.f32 %v89, %v107
    %v118 = vadd.f32 %v90, %v116
    %s119 = sadd.s32 0, 0
    %s120 = sadd.s32 %s119, 1
    %s121 = smul.u32 %s120, 16
    %p122 = scmp.le.s32.totalorder %s121, 16
    // Predicated region
    $region14: #{bce_with_logits_mean.1} parent=1 // pred_check
      %p123 = pneg %p122
    $region15: #{bce_with_logits_mean.1} parent=1 // pred_check_branch
      %125 = sbr.rel (%p123) target = $region17
    $region16: #{bce_with_logits_mean.1} parent=1 // pred_region
      %v126 = vld [vmem:[#allocation2] sm:$0xff]
      %v127 = vadd.f32 %v117, %v118
      %v128 = vadd.f32 %v126, %v127
      %129 = vst [vmem:[#allocation2] sm:$0xff] %v128
    $region17: #{bce_with_logits_mean.1} parent=1 // pred_fallthru
      _
    %p130 = scmp.gt.s32.totalorder %s121, 16
    // Predicated region
    $region18: #{bce_with_logits_mean.1} parent=1 // pred_check
      %p131 = pneg %p130
    $region19: #{bce_with_logits_mean.1} parent=1 // pred_check_branch
      %133 = sbr.rel (%p131) target = $region21
    $region20: #{bce_with_logits_mean.1} parent=1 // pred_region
      %s134 = smul.u32 %s119, 16
      %v135 = vlaneseq
      %v136 = vshrl.u32 %v135, 7
      %v137 = vadd.s32 %v136, 8
      %v138 = vstv %s134
      %v139 = vadd.s32 %v138, %v136
      %v140 = vadd.s32 %v138, %v137
      %vm141 = vcmp.lt.s32.totalorder %v139, 16
      %vm142 = vcmp.lt.s32.totalorder %v140, 16
      %v143 = vsel %vm141, %v117, 0.0
      %v144 = vsel %vm142, %v118, 0.0
      %v145 = vld [vmem:[#allocation2] sm:$0xff]
      %v146 = vadd.f32 %v143, %v144
      %v147 = vadd.f32 %v145, %v146
      %148 = vst [vmem:[#allocation2] sm:$0xff] %v147
    $region21: #{bce_with_logits_mean.1} parent=1 // pred_fallthru
      _
    // Predicated region
    $region22: #{bce_with_logits_mean.1} parent=1 // pred_check
      %p149 = pneg %p76
    $region23: #{bce_with_logits_mean.1} parent=1 // pred_check_branch
      %151 = sbr.rel (%p149) target = $region25
    $region24: #{bce_with_logits_mean.1} parent=1 // pred_region
      %v152 = vld [vmem:[#allocation2] sm:$0xff]
      %153 = vadd.xlane.f32.xlu0 %v152
      %v154 = vpop.xlane.xlu0 %153
      %v155 = vrot.slane %v154, 4
      %v156 = vadd.f32 %v154, %v155
      %v157 = vrot.slane %v156, 2
      %v158 = vadd.f32 %v156, %v157
      %v159 = vrot.slane %v158, 1
      %v160 = vadd.f32 %v158, %v159
      %s161 = vtos %v160
      %s162 = scalar_lea.smem [#allocation3], 0
      %163 = sst [smem:[%s162]] %s161
    $region25: #{bce_with_logits_mean.1} parent=1 // pred_fallthru
      _
    // Predicated region
    $region26: #{bce_with_logits_mean.1} parent=1 // pred_check
      _
    $region27: #{bce_with_logits_mean.1} parent=1 // pred_check_branch
      %165 = sbr.rel (0) target = $region29
    $region28: #{bce_with_logits_mean.1} parent=1 // pred_region
      %s167 = ssub.s32 16, 16
      %168 = vsyncadd [#allocation4], %s167
      %171 = dma.smem_to_hbm [#allocation3], 16, %s2, [#allocation4]
    $region29: #{bce_with_logits_mean.1} parent=1 // pred_fallthru
      _
    // Predicated region
    $region30: #{bce_with_logits_mean.1} parent=1 // pred_check
      _
    $region31: #{bce_with_logits_mean.1} parent=1 // pred_check_branch
      %173 = sbr.rel (0) target = $region33
    $region32: #{bce_with_logits_mean.1} parent=1 // pred_region
      %174 = dma.done [#allocation4], 16
    $region33: #{bce_with_logits_mean.1} parent=1 // pred_fallthru
      _
    %175 = sfence
    %176 = vsyncpa [#allocation4], 1

</llo_original>
